<compile_context>
chip_gen: v7x
topology: tpu7x:2x2x1
jax: 0.10.0
libtpu: 0.0.40
codegen_flags: <defaults>
</compile_context>

<pallas_src>
import functools

import jax
import jax.numpy as jnp
from jax.experimental import pallas as pl
from jax.experimental.pallas import tpu as pltpu


def _pam_kernel(xq_ref, xf_ref, wq_ref, bq_ref, wkva_ref, bkva_ref, gamma_ref,
                o_ref, *, mxu_dtype):
    # xq_ref: (C, TQ) query tile of x;  xf_ref: (C, HW) full image
    # wq_ref: (Cq_pad, C), bq_ref: (Cq_pad, 1)
    # wkva_ref: (Cq_pad + C + 1, C), bkva_ref: (Cq_pad + C + 1, 1)  (last row: w=0, b=1 -> ones)
    # gamma_ref: (1, 1) SMEM scalar;  o_ref: (C, TQ)
    x_q = xq_ref[...]                       # (C, TQ)  f32
    x_f = xf_ref[...]                       # (C, HW)  f32

    # --- fused 1x1-conv projections (channels on sublanes, positions on lanes) ---
    q = jnp.dot(wq_ref[...], x_q,
                preferred_element_type=jnp.float32) + bq_ref[...]      # (Cq_pad, TQ)
    kva = jnp.dot(wkva_ref[...], x_f,
                  preferred_element_type=jnp.float32) + bkva_ref[...]  # (Cq_pad+C+1, HW)

    cq_pad = wq_ref.shape[0]
    c = o_ref.shape[0]
    k = kva[:cq_pad, :]                     # (Cq_pad, HW)
    v_aug = kva[cq_pad:, :]                 # (C + 1, HW); last row == 1.0

    # --- energy[i, j] = <q[:, i], k[:, j]> on the MXU, softmax axis on lanes ---
    energy = jnp.einsum("ci,cj->ij",
                        q.astype(mxu_dtype), k.astype(mxu_dtype),
                        preferred_element_type=jnp.float32)            # (TQ, HW)

    # --- numerically stable, *unnormalized* softmax (f32 VPU/EUP math) ---
    m = jnp.max(energy, axis=-1, keepdims=True)
    p = jnp.exp(energy - m)                                            # (TQ, HW) f32

    # --- PV matmul; the appended ones row yields the softmax denominator
    #     already in (1, TQ) lane orientation ---
    out_aug = jnp.einsum("cj,ij->ci",
                         v_aug.astype(mxu_dtype), p.astype(mxu_dtype),
                         preferred_element_type=jnp.float32)           # (C + 1, TQ)

    # Fold gamma into the per-query reciprocal scale (EUP, ~free next to the exps).
    scale = gamma_ref[0, 0] * pl.reciprocal(out_aug[c:, :], approx=True)   # (1, TQ)
    o_ref[...] = (out_aug[:c, :] * scale + x_q).astype(o_ref.dtype)


def pam_forward(x, wq, bq, wk, bk, wv, bv, gamma, *,
                tq=128, mxu_dtype=jnp.bfloat16):
    """Pallas TPU forward of PAM.

    x: (B, C, H, W) float32.
    wq, wk: (C//4, C)  (PyTorch 1x1-conv weight (out, in) — used directly, no transpose)
    bq, bk: (C//4,);  wv: (C, C);  bv: (C,);  gamma: scalar.
    """
    B, C, H, W = x.shape
    HW = H * W
    Cq = wq.shape[0]
    f32 = jnp.float32

    tq = min(tq, HW)
    assert HW % tq == 0, "query tile must divide H*W"
    assert tq == HW or tq % 128 == 0, "query tile must be lane-aligned"

    # Pad Cq up to a sublane multiple so all in-kernel slices are 8-aligned.
    # Zero-padded q/k rows contribute 0 to the energy, so results are unchanged.
    cq_pad = max(8, ((Cq + 7) // 8) * 8)
    rows_kva = cq_pad + C + 1

    w_q = jnp.zeros((cq_pad, C), f32).at[:Cq].set(wq.astype(f32))
    b_q = jnp.zeros((cq_pad, 1), f32).at[:Cq, 0].set(bq.astype(f32))

    w_kva = jnp.zeros((rows_kva, C), f32)
    w_kva = w_kva.at[:Cq].set(wk.astype(f32))
    w_kva = w_kva.at[cq_pad:cq_pad + C].set(wv.astype(f32))
    b_kva = jnp.zeros((rows_kva, 1), f32)
    b_kva = b_kva.at[:Cq, 0].set(bk.astype(f32))
    b_kva = b_kva.at[cq_pad:cq_pad + C, 0].set(bv.astype(f32))
    b_kva = b_kva.at[cq_pad + C, 0].set(1.0)      # ones row -> softmax denominator

    x_flat = x.reshape(B, C, HW)                  # pure reshape, no HBM transpose
    gamma2 = jnp.asarray(gamma, f32).reshape(1, 1)

    kernel = functools.partial(_pam_kernel, mxu_dtype=mxu_dtype)

    out_flat = pl.pallas_call(
        kernel,
        out_shape=jax.ShapeDtypeStruct((B, C, HW), x.dtype),
        grid=(B, HW // tq),
        in_specs=[
            pl.BlockSpec((None, C, tq), lambda b, q: (b, 0, q)),    # x query tile
            pl.BlockSpec((None, C, HW), lambda b, q: (b, 0, 0)),    # x full (K/V source)
            pl.BlockSpec((cq_pad, C), lambda b, q: (0, 0)),         # Wq (padded, resident)
            pl.BlockSpec((cq_pad, 1), lambda b, q: (0, 0)),         # bq
            pl.BlockSpec((rows_kva, C), lambda b, q: (0, 0)),       # [Wk; 0; Wv; 0] fused
            pl.BlockSpec((rows_kva, 1), lambda b, q: (0, 0)),       # [bk; 0; bv; 1] fused
            pl.BlockSpec(memory_space=pltpu.MemorySpace.SMEM),      # gamma scalar
        ],
        out_specs=pl.BlockSpec((None, C, tq), lambda b, q: (b, 0, q)),
        compiler_params=pltpu.CompilerParams(
            dimension_semantics=("parallel", "parallel"),
        ),
    )(x_flat, x_flat, w_q, b_q, w_kva, b_kva, gamma2)

    return out_flat.reshape(B, C, H, W)


def _pam_reference(x, wq, bq, wk, bk, wv, bv, gamma):
    """Pure-JAX (f32) transcription of the PyTorch PAM.forward, for validation."""
    B, C, H, W = x.shape
    HW = H * W

    def conv1x1(v, wmat, bias):
        return jnp.einsum("oi,bihw->bohw", wmat, v) + bias[None, :, None, None]

    proj_query = conv1x1(x, wq, bq).reshape(B, -1, HW).transpose(0, 2, 1)  # (B, HW, Cq)
    proj_key = conv1x1(x, wk, bk).reshape(B, -1, HW)                       # (B, Cq, HW)
    energy = jnp.einsum("bic,bcj->bij", proj_query, proj_key)              # (B, HW, HW)
    attention = jax.nn.softmax(energy, axis=-1)
    proj_value = conv1x1(x, wv, bv).reshape(B, C, HW)                      # (B, C, HW)
    out = jnp.einsum("bcj,bij->bci", proj_value, attention)                # (B, C, HW)
    out = out.reshape(B, C, H, W)
    return gamma * out + x


if __name__ == "__main__":
    key = jax.random.PRNGKey(0)
    B, C, H, W = 2, 8, 16, 16          # in_channels=8 -> C//4 = 2
    Cq = C // 4

    keys = jax.random.split(key, 7)
    x = jax.random.normal(keys[0], (B, C, H, W), dtype=jnp.float32)
    wq = jax.random.normal(keys[1], (Cq, C), dtype=jnp.float32) * 0.2
    bq = jax.random.normal(keys[2], (Cq,), dtype=jnp.float32) * 0.1
    wk = jax.random.normal(keys[3], (Cq, C), dtype=jnp.float32) * 0.2
    bk = jax.random.normal(keys[4], (Cq,), dtype=jnp.float32) * 0.1
    wv = jax.random.normal(keys[5], (C, C), dtype=jnp.float32) * 0.2
    bv = jax.random.normal(keys[6], (C,), dtype=jnp.float32) * 0.1
    # The module initializes gamma to 0 (output == x); use a nonzero value so the
    # attention path is actually validated.
    gamma = jnp.float32(0.5)

    out = pam_forward(x, wq, bq, wk, bk, wv, bv, gamma)
    out = jax.block_until_ready(out)

    ref = _pam_reference(x, wq, bq, wk, bk, wv, bv, gamma)
    assert out.shape == (B, C, H, W)
    # bf16 MXU operands + approximate reciprocal -> relaxed tolerance vs f32 reference.
    assert jnp.allclose(out, ref, atol=5e-2, rtol=5e-2), "mismatch vs reference"

    print("KERNEL_OK")
</pallas_src>

<mosaic_0001>
module attributes {stable_mosaic.version = 11 : i64} {
  func.func @_pam_kernel(%arg0: i32, %arg1: i32, %arg2: memref<1x8x128xf32, #tpu.memory_space<vmem>>, %arg3: memref<1x8x256xf32, #tpu.memory_space<vmem>>, %arg4: memref<8x8xf32, #tpu.memory_space<vmem>>, %arg5: memref<8x1xf32, #tpu.memory_space<vmem>>, %arg6: memref<17x8xf32, #tpu.memory_space<vmem>>, %arg7: memref<17x1xf32, #tpu.memory_space<vmem>>, %arg8: memref<1x1xf32, #tpu.memory_space<smem>>, %arg9: memref<1x8x128xf32, #tpu.memory_space<vmem>>) attributes {dimension_semantics = [#tpu.dimension_semantics<parallel>, #tpu.dimension_semantics<parallel>], iteration_bounds = array<i64: 2, 2>, scalar_prefetch = 0 : i64, scratch_operands = 0 : i64, tpu.core_type = #tpu.core_type<tc>, window_params = [{transform_indices = @transform_0, window_bounds = array<i64: 1, 8, 128>}, {transform_indices = @transform_1, window_bounds = array<i64: 1, 8, 256>}, {pipeline_mode = #tpu.pipeline_mode<synchronous>, transform_indices = @transform_2, window_bounds = array<i64: 8, 8>}, {pipeline_mode = #tpu.pipeline_mode<synchronous>, transform_indices = @transform_3, window_bounds = array<i64: 8, 1>}, {pipeline_mode = #tpu.pipeline_mode<synchronous>, transform_indices = @transform_4, window_bounds = array<i64: 17, 8>}, {pipeline_mode = #tpu.pipeline_mode<synchronous>, transform_indices = @transform_5, window_bounds = array<i64: 17, 1>}, {transform_indices = @transform_6, window_bounds = array<i64: 1, 1>}, {transform_indices = @transform_7, window_bounds = array<i64: 1, 8, 128>}]} {
    %c0 = arith.constant 0 : index
    %c0_0 = arith.constant 0 : index
    %c0_1 = arith.constant 0 : index
    %0 = vector.load %arg2[%c0, %c0_0, %c0_1] : memref<1x8x128xf32, #tpu.memory_space<vmem>>, vector<1x8x128xf32>
    %1 = vector.shape_cast %0 : vector<1x8x128xf32> to vector<8x128xf32>
    %c0_2 = arith.constant 0 : index
    %c0_3 = arith.constant 0 : index
    %c0_4 = arith.constant 0 : index
    %2 = vector.load %arg3[%c0_2, %c0_3, %c0_4] : memref<1x8x256xf32, #tpu.memory_space<vmem>>, vector<1x8x256xf32>
    %3 = vector.shape_cast %2 : vector<1x8x256xf32> to vector<8x256xf32>
    %c0_5 = arith.constant 0 : index
    %c0_6 = arith.constant 0 : index
    %4 = vector.load %arg4[%c0_5, %c0_6] : memref<8x8xf32, #tpu.memory_space<vmem>>, vector<8x8xf32>
    %cst = arith.constant dense<0.000000e+00> : vector<8x128xf32>
    %5 = tpu.matmul %4, %1, %cst {dimension_numbers = #tpu.dot_dimension_numbers<[1], [0], [0], [1], [0, 0, 1, 1], [], []>} : vector<8x8xf32>, vector<8x128xf32>, vector<8x128xf32> -> vector<8x128xf32>
    %c0_7 = arith.constant 0 : index
    %c0_8 = arith.constant 0 : index
    %6 = vector.load %arg5[%c0_7, %c0_8] : memref<8x1xf32, #tpu.memory_space<vmem>>, vector<8x1xf32>
    %7 = vector.broadcast %6 : vector<8x1xf32> to vector<8x128xf32>
    %8 = arith.addf %5, %7 : vector<8x128xf32>
    %c0_9 = arith.constant 0 : index
    %c0_10 = arith.constant 0 : index
    %9 = vector.load %arg6[%c0_9, %c0_10] : memref<17x8xf32, #tpu.memory_space<vmem>>, vector<17x8xf32>
    %cst_11 = arith.constant dense<0.000000e+00> : vector<17x256xf32>
    %10 = tpu.matmul %9, %3, %cst_11 {dimension_numbers = #tpu.dot_dimension_numbers<[1], [0], [0], [1], [0, 0, 1, 1], [], []>} : vector<17x8xf32>, vector<8x256xf32>, vector<17x256xf32> -> vector<17x256xf32>
    %c0_12 = arith.constant 0 : index
    %c0_13 = arith.constant 0 : index
    %11 = vector.load %arg7[%c0_12, %c0_13] : memref<17x1xf32, #tpu.memory_space<vmem>>, vector<17x1xf32>
    %12 = vector.broadcast %11 : vector<17x1xf32> to vector<17x256xf32>
    %13 = arith.addf %10, %12 : vector<17x256xf32>
    %14 = vector.extract_strided_slice %13 {offsets = [0, 0], sizes = [8, 256], strides = [1, 1]} : vector<17x256xf32> to vector<8x256xf32>
    %15 = vector.extract_strided_slice %13 {offsets = [8, 0], sizes = [9, 256], strides = [1, 1]} : vector<17x256xf32> to vector<9x256xf32>
    %16 = arith.truncf %8 : vector<8x128xf32> to vector<8x128xbf16>
    %17 = arith.truncf %14 : vector<8x256xf32> to vector<8x256xbf16>
    "tpu.trace_start"() <{level = 10 : i32, message = "ci,cj->ij"}> : () -> ()
    %cst_14 = arith.constant dense<0.000000e+00> : vector<128x256xf32>
    %18 = tpu.matmul %16, %17, %cst_14 {dimension_numbers = #tpu.dot_dimension_numbers<[0], [0], [1], [1], [0, 1, 1, 1], [], []>} : vector<8x128xbf16>, vector<8x256xbf16>, vector<128x256xf32> -> vector<128x256xf32>
    "tpu.trace_stop"() : () -> ()
    %cst_15 = arith.constant dense<0xFF800000> : vector<128xf32>
    %19 = vector.multi_reduction <maximumf>, %18, %cst_15 [1] : vector<128x256xf32> to vector<128xf32>
    %20 = vector.shape_cast %19 : vector<128xf32> to vector<128x1xf32>
    %21 = vector.broadcast %20 : vector<128x1xf32> to vector<128x256xf32>
    %22 = arith.subf %18, %21 : vector<128x256xf32>
    %23 = math.exp %22 : vector<128x256xf32>
    %24 = arith.truncf %15 : vector<9x256xf32> to vector<9x256xbf16>
    %25 = arith.truncf %23 : vector<128x256xf32> to vector<128x256xbf16>
    "tpu.trace_start"() <{level = 10 : i32, message = "cj,ij->ci"}> : () -> ()
    %cst_16 = arith.constant dense<0.000000e+00> : vector<9x128xf32>
    %26 = tpu.matmul %24, %25, %cst_16 {dimension_numbers = #tpu.dot_dimension_numbers<[1], [1], [0], [0], [0, 0, 1, 0], [], []>} : vector<9x256xbf16>, vector<128x256xbf16>, vector<9x128xf32> -> vector<9x128xf32>
    "tpu.trace_stop"() : () -> ()
    %c0_17 = arith.constant 0 : index
    %c0_18 = arith.constant 0 : index
    %27 = memref.load %arg8[%c0_17, %c0_18] : memref<1x1xf32, #tpu.memory_space<smem>>
    %28 = vector.extract_strided_slice %26 {offsets = [8, 0], sizes = [1, 128], strides = [1, 1]} : vector<9x128xf32> to vector<1x128xf32>
    %29 = tpu.reciprocal %28 {approx = true} : vector<1x128xf32> -> vector<1x128xf32>
    %30 = vector.broadcast %27 : f32 to vector<1x128xf32>
    %31 = arith.mulf %30, %29 : vector<1x128xf32>
    %32 = vector.extract_strided_slice %26 {offsets = [0, 0], sizes = [8, 128], strides = [1, 1]} : vector<9x128xf32> to vector<8x128xf32>
    %33 = vector.broadcast %31 : vector<1x128xf32> to vector<8x128xf32>
    %34 = arith.mulf %32, %33 : vector<8x128xf32>
    %35 = arith.addf %34, %1 : vector<8x128xf32>
    %c0_19 = arith.constant 0 : index
    %c0_20 = arith.constant 0 : index
    %c0_21 = arith.constant 0 : index
    %36 = vector.load %arg9[%c0_19, %c0_20, %c0_21] : memref<1x8x128xf32, #tpu.memory_space<vmem>>, vector<1x8x128xf32>
    %37 = vector.shape_cast %36 : vector<1x8x128xf32> to vector<8x128xf32>
    %38 = vector.shape_cast %35 : vector<8x128xf32> to vector<1x8x128xf32>
    tpu.vector_store %arg9[%c0_19, %c0_20, %c0_21], %38 {strides = array<i32>} : memref<1x8x128xf32, #tpu.memory_space<vmem>>, vector<1x8x128xf32>,
    return
  }
  func.func @transform_0(%arg0: i32, %arg1: i32) -> (i32, i32, i32) {
    %c0_i32 = arith.constant 0 : i32
    %c0_i32_0 = arith.constant 0 : i32
    return %arg0, %c0_i32, %arg1 : i32, i32, i32
  }
  func.func @transform_1(%arg0: i32, %arg1: i32) -> (i32, i32, i32) {
    %c0_i32 = arith.constant 0 : i32
    %c0_i32_0 = arith.constant 0 : i32
    %c0_i32_1 = arith.constant 0 : i32
    return %arg0, %c0_i32, %c0_i32_0 : i32, i32, i32
  }
  func.func @transform_2(%arg0: i32, %arg1: i32) -> (i32, i32) {
    %c0_i32 = arith.constant 0 : i32
    %c0_i32_0 = arith.constant 0 : i32
    %c0_i32_1 = arith.constant 0 : i32
    return %c0_i32, %c0_i32_0 : i32, i32
  }
  func.func @transform_3(%arg0: i32, %arg1: i32) -> (i32, i32) {
    %c0_i32 = arith.constant 0 : i32
    %c0_i32_0 = arith.constant 0 : i32
    %c0_i32_1 = arith.constant 0 : i32
    return %c0_i32, %c0_i32_0 : i32, i32
  }
  func.func @transform_4(%arg0: i32, %arg1: i32) -> (i32, i32) {
    %c0_i32 = arith.constant 0 : i32
    %c0_i32_0 = arith.constant 0 : i32
    %c0_i32_1 = arith.constant 0 : i32
    return %c0_i32, %c0_i32_0 : i32, i32
  }
  func.func @transform_5(%arg0: i32, %arg1: i32) -> (i32, i32) {
    %c0_i32 = arith.constant 0 : i32
    %c0_i32_0 = arith.constant 0 : i32
    %c0_i32_1 = arith.constant 0 : i32
    return %c0_i32, %c0_i32_0 : i32, i32
  }
  func.func @transform_6(%arg0: i32, %arg1: i32) -> (i32, i32) {
    %c0_i32 = arith.constant 0 : i32
    %c0_i32_0 = arith.constant 0 : i32
    %c0_i32_1 = arith.constant 0 : i32
    return %c0_i32, %c0_i32_0 : i32, i32
  }
  func.func @transform_7(%arg0: i32, %arg1: i32) -> (i32, i32, i32) {
    %c0_i32 = arith.constant 0 : i32
    %c0_i32_0 = arith.constant 0 : i32
    return %arg0, %c0_i32, %arg1 : i32, i32, i32
  }
}

</mosaic_0001>

<llo_original>
// kernel: tpu_custom_call.1
$region0: #{tpu_custom_call.1}
  #allocation0 [shape = 'u32[]', space=smem, size = 0x4, offset = 0x4, fixed_abs, tag = 'smem constant byte address 0x4 - core index']
  #allocation1 [shape = 'u32[144,128]{1,0:T(1,128)}', space=vmem, size = 0x12000, scoped, tag = 'internal scratch']
  #allocation2 [shape = 'f32[1,1]{1,0:T(1,128)S(6)}', space=smem, size = 0x200, scoped, tag = 'scoped memory for tpu_custom_call.1']
  %s0 = inlined_call_operand.vmem [shape: f32[2,8,256], index: 0, kind: input, shape index: {}]
  %s1 = inlined_call_operand.vmem [shape: f32[2,8,256], index: 1, kind: input, shape index: {}]
  %s2 = inlined_call_operand.vmem [shape: f32[8,8], index: 2, kind: input, shape index: {}]
  %s3 = inlined_call_operand.vmem [shape: f32[8,1], index: 3, kind: input, shape index: {}]
  %s4 = inlined_call_operand.vmem [shape: f32[17,8], index: 4, kind: input, shape index: {}]
  %s5 = inlined_call_operand.vmem [shape: f32[17,1], index: 5, kind: input, shape index: {}]
  %s6 = inlined_call_operand.<no memory space> [shape: f32[1,1], index: 6, kind: input, shape index: {}]
  %s7 = inlined_call_operand.hbm [shape: f32[2,8,256], index: 7, kind: output, shape index: {}]
  %s8 = sld [smem:[#allocation0]]
  $region61: #{tpu_custom_call.1} parent=0
    _
  %s10 = ssub.s32 1, %s8
  %s11 = scalar_select 0, %s10, %s8
  %12 = sst [smem:[#allocation2]] %s6
  $region1: #{tpu_custom_call.1} parent=0
    #allocation3 [shape = 'u8[8192]{0}', space=vmem, size = 0x2000, scoped, tag = 'output window, operand 0']
    #allocation4 [shape = 's32[2]{0}', space=sflag, size = 0x8, scoped, tag = 'scoped memory for tpu_custom_call.1']
    %13 = vsyncpa [#allocation4], 0
    %s14 = scalar_lea.sflag [#allocation4], 1
    %15 = vsyncpa %s14, 0
    loop: start=0, step=1, limit=6
    $region2: #{tpu_custom_call.1} parent=1 // loop_pre_header
      _
    $region3: #{tpu_custom_call.1} parent=1 // loop_header
      %s17 = sphi 0, %s21
      %p18 = scmp.ge.s32.totalorder %s17, 6
      %s24 = sphi 0, %s36
      %s25 = sphi 0, %s32
      %s26 = sphi 0, %s24
      %s27 = sphi 0, %s25
      %s28 = sphi 0, %s26
      %s29 = sphi 0, %s27
      %s41 = sphi 0, %s43
      %s44 = sphi 0, %s41
      %s45 = sphi 0, %s44
      %s61 = sphi 0, %s45
      %s67 = sphi 0, %s69
      %s70 = sphi 0, %s67
      %s71 = sphi 0, %s70
      %s87 = sphi 0, %s71
      %s91 = sphi 0, %s91
      %s93 = sphi 0, %s91
      %s94 = sphi 0, %s93
      %s108 = sphi 0, %s94
      %s112 = sphi 0, %s112
      %s114 = sphi 0, %s112
      %s115 = sphi 0, %s114
      %s129 = sphi 0, %s115
      %s133 = sphi 0, %s133
      %s135 = sphi 0, %s133
      %s136 = sphi 0, %s135
      %s150 = sphi 0, %s136
      %s154 = sphi 0, %s154
      %s156 = sphi 0, %s154
      %s157 = sphi 0, %s156
      %s171 = sphi 0, %s157
      %s175 = sphi 0, %s175
      %s177 = sphi 0, %s175
      %s178 = sphi 0, %s177
      %s192 = sphi 0, %s178
      %s200 = sphi 0, %s202
      %s203 = sphi 0, %s200
      %s204 = sphi 0, %s203
      %s220 = sphi 0, %s204
    $region4: #{tpu_custom_call.1} parent=1 // loop_header_branch
      %20 = sbr.rel (%p18) target = $region8
    $region5: #{tpu_custom_call.1} parent=1 // loop_body
      %s22 = ssub.s32 %s17, 1
      %s23 = ssub.s32 %s17, 2
      %s30 = sadd.s32 1, %s25
      %p31 = scmp.ge.s32.totalorder %s30, 2
      %s32 = scalar_select %p31, 0, %s30
      %s33 = sadd.s32 1, %s24
      %s34 = scalar_select %p31, %s33, %s24
      %p35 = scmp.ge.s32.totalorder %s34, 2
      %s36 = scalar_select %p35, 0, %s34
      %s37 = ssub.s32 %s24, %s36
      %s38 = ssub.s32 %s25, %s32
      %s39 = sor.u32 %s37, %s38
      %p40 = scmp.eq.s32.totalorder %s39, 0
      %s42 = sadd.s32 %s41, 1
      %s43 = scalar_select %p40, %s41, %s42
      %p46 = pneg %p40
      %p47 = scmp.eq.s32.totalorder %s17, 3
      %p48 = por %p46, %p47
      %p49 = scmp.ne.s32.totalorder %s41, %s44
      %p50 = scmp.eq.s32.totalorder %s17, 0
      %p51 = por %p49, %p50
      %p52 = scmp.ne.s32.totalorder %s41, %s44
      %p53 = scmp.eq.s32.totalorder %s22, 3
      %p54 = por %p52, %p53
      %p55 = scmp.ne.s32.totalorder %s44, %s45
      %p56 = scmp.eq.s32.totalorder %s22, 0
      %p57 = por %p55, %p56
      %p58 = scmp.ne.s32.totalorder %s44, %s45
      %p59 = scmp.eq.s32.totalorder %s23, 3
      %p60 = por %p58, %p59
      %p62 = scmp.ne.s32.totalorder %s45, %s61
      %p63 = scmp.eq.s32.totalorder %s23, 0
      %p64 = por %p62, %p63
      %s65 = ssub.s32 %s24, %s36
      %p66 = scmp.eq.s32.totalorder %s65, 0
      %s68 = sadd.s32 %s67, 1
      %s69 = scalar_select %p66, %s67, %s68
      %p72 = pneg %p66
      %p73 = scmp.eq.s32.totalorder %s17, 3
      %p74 = por %p72, %p73
      %p75 = scmp.ne.s32.totalorder %s67, %s70
      %p76 = scmp.eq.s32.totalorder %s17, 0
      %p77 = por %p75, %p76
      %p78 = scmp.ne.s32.totalorder %s67, %s70
      %p79 = scmp.eq.s32.totalorder %s22, 3
      %p80 = por %p78, %p79
      %p81 = scmp.ne.s32.totalorder %s70, %s71
      %p82 = scmp.eq.s32.totalorder %s22, 0
      %p83 = por %p81, %p82
      %p84 = scmp.ne.s32.totalorder %s70, %s71
      %p85 = scmp.eq.s32.totalorder %s23, 3
      %p86 = por %p84, %p85
      %p88 = scmp.ne.s32.totalorder %s71, %s87
      %p89 = scmp.eq.s32.totalorder %s23, 0
      %p90 = por %p88, %p89
      %s92 = sadd.s32 %s91, 1
      %p95 = scmp.eq.s32.totalorder %s17, 3
      %p96 = scmp.ne.s32.totalorder %s91, %s93
      %p97 = scmp.eq.s32.totalorder %s17, 0
      %p98 = por %p96, %p97
      %p99 = scmp.ne.s32.totalorder %s91, %s93
      %p100 = scmp.eq.s32.totalorder %s22, 3
      %p101 = por %p99, %p100
      %p102 = scmp.ne.s32.totalorder %s93, %s94
      %p103 = scmp.eq.s32.totalorder %s22, 0
      %p104 = por %p102, %p103
      %p105 = scmp.ne.s32.totalorder %s93, %s94
      %p106 = scmp.eq.s32.totalorder %s23, 3
      %p107 = por %p105, %p106
      %p109 = scmp.ne.s32.totalorder %s94, %s108
      %p110 = scmp.eq.s32.totalorder %s23, 0
      %p111 = por %p109, %p110
      %s113 = sadd.s32 %s112, 1
      %p116 = scmp.eq.s32.totalorder %s17, 3
      %p117 = scmp.ne.s32.totalorder %s112, %s114
      %p118 = scmp.eq.s32.totalorder %s17, 0
      %p119 = por %p117, %p118
      %p120 = scmp.ne.s32.totalorder %s112, %s114
      %p121 = scmp.eq.s32.totalorder %s22, 3
      %p122 = por %p120, %p121
      %p123 = scmp.ne.s32.totalorder %s114, %s115
      %p124 = scmp.eq.s32.totalorder %s22, 0
      %p125 = por %p123, %p124
      %p126 = scmp.ne.s32.totalorder %s114, %s115
      %p127 = scmp.eq.s32.totalorder %s23, 3
      %p128 = por %p126, %p127
      %p130 = scmp.ne.s32.totalorder %s115, %s129
      %p131 = scmp.eq.s32.totalorder %s23, 0
      %p132 = por %p130, %p131
      %s134 = sadd.s32 %s133, 1
      %p137 = scmp.eq.s32.totalorder %s17, 3
      %p138 = scmp.ne.s32.totalorder %s133, %s135
      %p139 = scmp.eq.s32.totalorder %s17, 0
      %p140 = por %p138, %p139
      %p141 = scmp.ne.s32.totalorder %s133, %s135
      %p142 = scmp.eq.s32.totalorder %s22, 3
      %p143 = por %p141, %p142
      %p144 = scmp.ne.s32.totalorder %s135, %s136
      %p145 = scmp.eq.s32.totalorder %s22, 0
      %p146 = por %p144, %p145
      %p147 = scmp.ne.s32.totalorder %s135, %s136
      %p148 = scmp.eq.s32.totalorder %s23, 3
      %p149 = por %p147, %p148
      %p151 = scmp.ne.s32.totalorder %s136, %s150
      %p152 = scmp.eq.s32.totalorder %s23, 0
      %p153 = por %p151, %p152
      %s155 = sadd.s32 %s154, 1
      %p158 = scmp.eq.s32.totalorder %s17, 3
      %p159 = scmp.ne.s32.totalorder %s154, %s156
      %p160 = scmp.eq.s32.totalorder %s17, 0
      %p161 = por %p159, %p160
      %p162 = scmp.ne.s32.totalorder %s154, %s156
      %p163 = scmp.eq.s32.totalorder %s22, 3
      %p164 = por %p162, %p163
      %p165 = scmp.ne.s32.totalorder %s156, %s157
      %p166 = scmp.eq.s32.totalorder %s22, 0
      %p167 = por %p165, %p166
      %p168 = scmp.ne.s32.totalorder %s156, %s157
      %p169 = scmp.eq.s32.totalorder %s23, 3
      %p170 = por %p168, %p169
      %p172 = scmp.ne.s32.totalorder %s157, %s171
      %p173 = scmp.eq.s32.totalorder %s23, 0
      %p174 = por %p172, %p173
      %s176 = sadd.s32 %s175, 1
      %p179 = scmp.eq.s32.totalorder %s17, 3
      %p180 = scmp.ne.s32.totalorder %s175, %s177
      %p181 = scmp.eq.s32.totalorder %s17, 0
      %p182 = por %p180, %p181
      %p183 = scmp.ne.s32.totalorder %s175, %s177
      %p184 = scmp.eq.s32.totalorder %s22, 3
      %p185 = por %p183, %p184
      %p186 = scmp.ne.s32.totalorder %s177, %s178
      %p187 = scmp.eq.s32.totalorder %s22, 0
      %p188 = por %p186, %p187
      %p189 = scmp.ne.s32.totalorder %s177, %s178
      %p190 = scmp.eq.s32.totalorder %s23, 3
      %p191 = por %p189, %p190
      %p193 = scmp.ne.s32.totalorder %s178, %s192
      %p194 = scmp.eq.s32.totalorder %s23, 0
      %p195 = por %p193, %p194
      %s196 = ssub.s32 %s24, %s36
      %s197 = ssub.s32 %s25, %s32
      %s198 = sor.u32 %s196, %s197
      %p199 = scmp.eq.s32.totalorder %s198, 0
      %s201 = sadd.s32 %s200, 1
      %s202 = scalar_select %p199, %s200, %s201
      %p205 = pneg %p199
      %p206 = scmp.eq.s32.totalorder %s17, 3
      %p207 = por %p205, %p206
      %p208 = scmp.ne.s32.totalorder %s200, %s203
      %p209 = scmp.eq.s32.totalorder %s17, 0
      %p210 = por %p208, %p209
      %p211 = scmp.ne.s32.totalorder %s200, %s203
      %p212 = scmp.eq.s32.totalorder %s22, 3
      %p213 = por %p211, %p212
      %p214 = scmp.ne.s32.totalorder %s203, %s204
      %p215 = scmp.eq.s32.totalorder %s22, 0
      %p216 = por %p214, %p215
      %p217 = scmp.ne.s32.totalorder %s203, %s204
      %p218 = scmp.eq.s32.totalorder %s23, 3
      %p219 = por %p217, %p218
      %p221 = scmp.ne.s32.totalorder %s204, %s220
      %p222 = scmp.eq.s32.totalorder %s23, 0
      %p223 = por %p221, %p222
      %p224 = scmp.le.s32.totalorder 1, %s17
      %p225 = scmp.lt.s32.totalorder %s17, 5
      %p226 = pnand %p224, %p225
      %p227 = pneg %p226
      // Predicated region
      $region9: #{tpu_custom_call.1} parent=5 // pred_check
        _
      $region10: #{tpu_custom_call.1} parent=5 // pred_check_branch
        %229 = sbr.rel (%p226) target = $region12
      $region11: #{tpu_custom_call.1} parent=5 // pred_region
        %s230 = ssub.s32 %s17, 1
        // Predicated region
        $region13: #{tpu_custom_call.1} parent=11 // pred_check
          %p231 = pneg %p104
        $region14: #{tpu_custom_call.1} parent=11 // pred_check_branch
          %233 = sbr.rel (%p231) target = $region16
        $region15: #{tpu_custom_call.1} parent=11 // pred_region
          _
        $region16: #{tpu_custom_call.1} parent=11 // pred_fallthru
          _
        // Predicated region
        $region17: #{tpu_custom_call.1} parent=11 // pred_check
          %p234 = pneg %p125
        $region18: #{tpu_custom_call.1} parent=11 // pred_check_branch
          %236 = sbr.rel (%p234) target = $region20
        $region19: #{tpu_custom_call.1} parent=11 // pred_region
          _
        $region20: #{tpu_custom_call.1} parent=11 // pred_fallthru
          _
        // Predicated region
        $region21: #{tpu_custom_call.1} parent=11 // pred_check
          %p237 = pneg %p146
        $region22: #{tpu_custom_call.1} parent=11 // pred_check_branch
          %239 = sbr.rel (%p237) target = $region24
        $region23: #{tpu_custom_call.1} parent=11 // pred_region
          _
        $region24: #{tpu_custom_call.1} parent=11 // pred_fallthru
          _
        // Predicated region
        $region25: #{tpu_custom_call.1} parent=11 // pred_check
          %p240 = pneg %p167
        $region26: #{tpu_custom_call.1} parent=11 // pred_check_branch
          %242 = sbr.rel (%p240) target = $region28
        $region27: #{tpu_custom_call.1} parent=11 // pred_region
          _
        $region28: #{tpu_custom_call.1} parent=11 // pred_fallthru
          _
        // Predicated region
        $region29: #{tpu_custom_call.1} parent=11 // pred_check
          %p243 = pneg %p188
        $region30: #{tpu_custom_call.1} parent=11 // pred_check_branch
          %245 = sbr.rel (%p243) target = $region32
        $region31: #{tpu_custom_call.1} parent=11 // pred_region
          _
        $region32: #{tpu_custom_call.1} parent=11 // pred_fallthru
          _
      $region12: #{tpu_custom_call.1} parent=5 // pred_fallthru
        _
      %p246 = scmp.lt.s32.totalorder %s17, 4
      // Predicated region
      $region33: #{tpu_custom_call.1} parent=5 // pred_check
        %p247 = pneg %p246
      $region34: #{tpu_custom_call.1} parent=5 // pred_check_branch
        %249 = sbr.rel (%p247) target = $region36
      $region35: #{tpu_custom_call.1} parent=5 // pred_region
        // Predicated region
        $region37: #{tpu_custom_call.1} parent=35 // pred_check
          %p250 = pneg %p51
        $region38: #{tpu_custom_call.1} parent=35 // pred_check_branch
          %252 = sbr.rel (%p250) target = $region40
        $region39: #{tpu_custom_call.1} parent=35 // pred_region
          %p253 = scmp.lt.s32.totalorder %s24, 1
          %s254 = scalar_select %p253, %s24, 1
          %p255 = scmp.lt.s32.totalorder %s25, 1
          %s256 = scalar_select %p255, %s25, 1
          %s257 = smul.addr %s254, 2
          %s258 = sadd.s32 %s256, %s257
          %s259 = smul.addr %s258, 8
          %s260 = scalar_lea.vmem %s0, %s259
        $region40: #{tpu_custom_call.1} parent=35 // pred_fallthru
          _
        // Predicated region
        $region41: #{tpu_custom_call.1} parent=35 // pred_check
          %p261 = pneg %p77
        $region42: #{tpu_custom_call.1} parent=35 // pred_check_branch
          %263 = sbr.rel (%p261) target = $region44
        $region43: #{tpu_custom_call.1} parent=35 // pred_region
          %p264 = scmp.lt.s32.totalorder %s24, 1
          %s265 = scalar_select %p264, %s24, 1
          %s266 = smul.addr %s265, 2
          %s267 = smul.addr %s266, 8
          %s268 = scalar_lea.vmem %s1, %s267
        $region44: #{tpu_custom_call.1} parent=35 // pred_fallthru
          _
      $region36: #{tpu_custom_call.1} parent=5 // pred_fallthru
        _
      %p269 = scmp.le.s32.totalorder 1, %s17
      %p270 = scmp.lt.s32.totalorder %s17, 5
      %p271 = pnand %p269, %p270
      %p272 = pneg %p271
      // Predicated region
      $region45: #{tpu_custom_call.1} parent=5 // pred_check
        _
      $region46: #{tpu_custom_call.1} parent=5 // pred_check_branch
        %274 = sbr.rel (%p271) target = $region48
      $region47: #{tpu_custom_call.1} parent=5 // pred_region
        %s275 = ssub.s32 %s17, 1
        %p276 = scmp.lt.s32.totalorder %s26, 1
        %s277 = scalar_select %p276, %s26, 1
        %p278 = scmp.lt.s32.totalorder %s27, 1
        %s279 = scalar_select %p278, %s27, 1
        %s280 = smul.addr %s277, 2
        %s281 = sadd.s32 %s279, %s280
        %s282 = smul.addr %s281, 8
        %s283 = scalar_lea.vmem %s0, %s282
        %p284 = pneg %p57
        %p285 = pneg %p54
        %p286 = scmp.lt.s32.totalorder %s26, 1
        %s287 = scalar_select %p286, %s26, 1
        %s288 = smul.addr %s287, 2
        %s289 = smul.addr %s288, 8
        %s290 = scalar_lea.vmem %s1, %s289
        %p291 = pneg %p83
        %p292 = pneg %p80
        %p293 = pneg %p104
        %p294 = pneg %p101
        %p295 = pneg %p125
        %p296 = pneg %p122
        %p297 = pneg %p146
        %p298 = pneg %p143
        %p299 = pneg %p167
        %p300 = pneg %p164
        %p301 = pneg %p188
        %p302 = pneg %p185
        %p303 = pneg %p216
        %p304 = pneg %p213
        %s305 = sand.u32 %s203, 1
        %s306 = scalar_lea.sflag [#allocation4], %s305
        %s307 = sand.u32 %s203, 1
        %s308 = smul.addr %s307, 8
        %s309 = scalar_lea.vmem [#allocation3], %s308
        %p310 = scmp.lt.s32.totalorder %s26, 1
        %s311 = scalar_select %p310, %s26, 1
        %p312 = scmp.lt.s32.totalorder %s27, 1
        %s313 = scalar_select %p312, %s27, 1
        %s314 = smul.addr %s311, 2
        %s315 = sadd.s32 %s313, %s314
        %s316 = smul.addr %s315, 8
        %s317 = scalar_lea.vmem %s0, %s316
        %p318 = scmp.lt.s32.totalorder %s26, 1
        %s319 = scalar_select %p318, %s26, 1
        %s320 = smul.addr %s319, 2
        %s321 = smul.addr %s320, 8
        %s322 = scalar_lea.vmem %s1, %s321
        %v324 = vld [vmem:[%s317] sm:$0xff]
        %v325 = vld [vmem:[%s322] sm:$0xff]
        %v326 = vld [vmem:[%s322 + $0x8] sm:$0xff]
        %v327 = vld [vmem:[%s2] sm:$0xff]
        %v328 = vld [vmem:[%s3] sm:$0xff]
        %330 = vset.pattern.permute.xlu0 0
        %331 = vperm.xlu0 %330, %v328
        %v332 = vpop.permute.xlu0 %331
        %vm334 = vcmask 64512
        %v336 = vsel %vm334, %v327, 0
        %338 = vmatprep.subr.mxu0 0.0
        %339 = vmatpush1.msra.mxu0 %v324
        %340 = vmatprep.subr.mxu0 0.0
        %341 = vmatpush1.msra.mxu0 0.0
        %342 = vmatprep.subr.mxu0 0.0
        %343 = vmatpush1.msra.mxu0 0.0
        %344 = vmatprep.subr.mxu0 0.0
        %345 = vmatpush1.msra.mxu0 0.0
        %346 = vmatprep.subr.mxu0 0.0
        %347 = vmatpush1.msra.mxu0 0.0
        %348 = vmatprep.subr.mxu0 0.0
        %349 = vmatpush1.msra.mxu0 0.0
        %350 = vmatprep.subr.mxu0 0.0
        %351 = vmatpush1.msra.mxu0 0.0
        %352 = vmatprep.subr.mxu0 0.0
        %353 = vmatpush1.msra.mxu0 0.0
        %354 = vmatprep.subr.mxu0 0.0
        %355 = vmatpush1.msra.mxu0 0.0
        %356 = vmatprep.subr.mxu0 0.0
        %357 = vmatpush1.msra.mxu0 0.0
        %358 = vmatprep.subr.mxu0 0.0
        %359 = vmatpush1.msra.mxu0 0.0
        %360 = vmatprep.subr.mxu0 0.0
        %361 = vmatpush1.msra.mxu0 0.0
        %362 = vmatprep.subr.mxu0 0.0
        %363 = vmatpush1.msra.mxu0 0.0
        %364 = vmatprep.subr.mxu0 0.0
        %365 = vmatpush1.msra.mxu0 0.0
        %366 = vmatprep.subr.mxu0 0.0
        %367 = vmatpush1.msra.mxu0 0.0
        %368 = vmatprep.subr.mxu0 0.0
        %369 = vmatpush1.msra.mxu0 0.0
        %370 = vmatprep.subr.mxu0 0.0
        %371 = vmatpush1.msra.mxu0 0.0
        %372 = vmatprep.subr.mxu0 0.0
        %373 = vmatpush1.msra.mxu0 0.0
        %374 = vmatprep.subr.mxu0 0.0
        %375 = vmatpush1.msra.mxu0 0.0
        %376 = vmatprep.subr.mxu0 0.0
        %377 = vmatpush1.msra.mxu0 0.0
        %378 = vmatprep.subr.mxu0 0.0
        %379 = vmatpush1.msra.mxu0 0.0
        %380 = vmatprep.subr.mxu0 0.0
        %381 = vmatpush1.msra.mxu0 0.0
        %382 = vmatprep.subr.mxu0 0.0
        %383 = vmatpush1.msra.mxu0 0.0
        %384 = vmatprep.subr.mxu0 0.0
        %385 = vmatpush1.msra.mxu0 0.0
        %386 = vmatprep.subr.mxu0 0.0
        %387 = vmatpush1.msra.mxu0 0.0
        %388 = vmatprep.subr.mxu0 0.0
        %389 = vmatpush1.msra.mxu0 0.0
        %390 = vmatprep.subr.mxu0 0.0
        %391 = vmatpush1.msra.mxu0 0.0
        %392 = vmatprep.subr.mxu0 0.0
        %393 = vmatpush1.msra.mxu0 0.0
        %394 = vmatprep.subr.mxu0 0.0
        %395 = vmatpush1.msra.mxu0 0.0
        %396 = vmatprep.subr.mxu0 0.0
        %397 = vmatpush1.msra.mxu0 0.0
        %398 = vmatprep.subr.mxu0 0.0
        %399 = vmatpush1.msra.mxu0 0.0
        %400 = vmatprep.subr.mxu0 0.0
        %401 = vmatpush1.msra.mxu0 0.0
        %402 = vmatprep.mubr.f32.mxu0 0.0
        %403 = vmatmul.mubr.f32.gmra.mrb[0].mxu0 %v336
        %v404 = vpop.f32.mrb[0].mxu0
        %v405 = vadd.f32 %v332, %v404
        %v406 = vpop.f32.mrb[0].mxu0
        %407 = vdwg.mxu0
        %v408 = vld [vmem:[%s4] sm:$0xff]
        %v409 = vld [vmem:[%s4 + $0x8] sm:$0xff]
        %v410 = vld [vmem:[%s4 + $0x10] sm:$0x1]
        %v411 = vld [vmem:[%s5] sm:$0xff]
        %v412 = vld [vmem:[%s5 + $0x8] sm:$0xff]
        %v413 = vld [vmem:[%s5 + $0x10] sm:$0x1]
        %415 = vset.pattern.permute.xlu0 0
        %416 = vperm.xlu0 %415, %v411
        %v417 = vpop.permute.xlu0 %416
        %420 = vset.pattern.permute.xlu0 0
        %421 = vperm.xlu0 %420, %v412
        %v422 = vpop.permute.xlu0 %421
        %425 = vset.pattern.permute.xlu0 0
        %426 = vperm.xlu0 %425, %v413
        %v427 = vpop.permute.xlu0 %426
        %v430 = vsel %vm334, %v408, 0
        %v433 = vsel %vm334, %v409, 0
        %v436 = vsel %vm334, %v410, 0
        %438 = vmatprep.subr.mxu0 %v326
        %439 = vmatpush1.msra.mxu0 %v325
        %440 = vmatprep.subr.mxu0 0.0
        %441 = vmatpush1.msra.mxu0 0.0
        %442 = vmatprep.subr.mxu0 0.0
        %443 = vmatpush1.msra.mxu0 0.0
        %444 = vmatprep.subr.mxu0 0.0
        %445 = vmatpush1.msra.mxu0 0.0
        %446 = vmatprep.subr.mxu0 0.0
        %447 = vmatpush1.msra.mxu0 0.0
        %448 = vmatprep.subr.mxu0 0.0
        %449 = vmatpush1.msra.mxu0 0.0
        %450 = vmatprep.subr.mxu0 0.0
        %451 = vmatpush1.msra.mxu0 0.0
        %452 = vmatprep.subr.mxu0 0.0
        %453 = vmatpush1.msra.mxu0 0.0
        %454 = vmatprep.subr.mxu0 0.0
        %455 = vmatpush1.msra.mxu0 0.0
        %456 = vmatprep.subr.mxu0 0.0
        %457 = vmatpush1.msra.mxu0 0.0
        %458 = vmatprep.subr.mxu0 0.0
        %459 = vmatpush1.msra.mxu0 0.0
        %460 = vmatprep.subr.mxu0 0.0
        %461 = vmatpush1.msra.mxu0 0.0
        %462 = vmatprep.subr.mxu0 0.0
        %463 = vmatpush1.msra.mxu0 0.0
        %464 = vmatprep.subr.mxu0 0.0
        %465 = vmatpush1.msra.mxu0 0.0
        %466 = vmatprep.subr.mxu0 0.0
        %467 = vmatpush1.msra.mxu0 0.0
        %468 = vmatprep.subr.mxu0 0.0
        %469 = vmatpush1.msra.mxu0 0.0
        %470 = vmatprep.subr.mxu0 0.0
        %471 = vmatpush1.msra.mxu0 0.0
        %472 = vmatprep.subr.mxu0 0.0
        %473 = vmatpush1.msra.mxu0 0.0
        %474 = vmatprep.subr.mxu0 0.0
        %475 = vmatpush1.msra.mxu0 0.0
        %476 = vmatprep.subr.mxu0 0.0
        %477 = vmatpush1.msra.mxu0 0.0
        %478 = vmatprep.subr.mxu0 0.0
        %479 = vmatpush1.msra.mxu0 0.0
        %480 = vmatprep.subr.mxu0 0.0
        %481 = vmatpush1.msra.mxu0 0.0
        %482 = vmatprep.subr.mxu0 0.0
        %483 = vmatpush1.msra.mxu0 0.0
        %484 = vmatprep.subr.mxu0 0.0
        %485 = vmatpush1.msra.mxu0 0.0
        %486 = vmatprep.subr.mxu0 0.0
        %487 = vmatpush1.msra.mxu0 0.0
        %488 = vmatprep.subr.mxu0 0.0
        %489 = vmatpush1.msra.mxu0 0.0
        %490 = vmatprep.subr.mxu0 0.0
        %491 = vmatpush1.msra.mxu0 0.0
        %492 = vmatprep.subr.mxu0 0.0
        %493 = vmatpush1.msra.mxu0 0.0
        %494 = vmatprep.subr.mxu0 0.0
        %495 = vmatpush1.msra.mxu0 0.0
        %496 = vmatprep.subr.mxu0 0.0
        %497 = vmatpush1.msra.mxu0 0.0
        %498 = vmatprep.subr.mxu0 0.0
        %499 = vmatpush1.msra.mxu0 0.0
        %500 = vmatprep.subr.mxu0 0.0
        %501 = vmatpush1.msra.mxu0 0.0
        %502 = vmatprep.mubr.f32.mxu0 0.0
        %503 = vmatmul.mubr.f32.gmra.mrb[0].mxu0 %v430
        %v504 = vpop.f32.mrb[0].mxu0
        %v505 = vadd.f32 %v417, %v504
        %v506 = vpop.f32.mrb[0].mxu0
        %v507 = vadd.f32 %v417, %v506
        %508 = vmatprep.mubr.f32.mxu0 0.0
        %509 = vmatmul.mubr.f32.gmra.mrb[0].mxu0 %v433
        %v510 = vpop.f32.mrb[0].mxu0
        %v511 = vadd.f32 %v422, %v510
        %v512 = vpop.f32.mrb[0].mxu0
        %v513 = vadd.f32 %v422, %v512
        %514 = vmatprep.mubr.f32.mxu0 0.0
        %515 = vmatmul.mubr.f32.gmra.mrb[0].mxu0 %v436
        %v516 = vpop.f32.mrb[0].mxu0
        %v517 = vadd.f32 %v427, %v516
        %v518 = vpop.f32.mrb[0].mxu0
        %v519 = vadd.f32 %v427, %v518
        %520 = vdwg.mxu0
        %v521 = vpack.c.bf16 %v405, %v405
        %v522 = vpack.c.bf16 %v505, %v505
        %v523 = vpack.c.bf16 %v507, %v507
        %524 = vxpose.xlu0.c.b16.start [1/8] %v521, 128
        %525 = vxpose.xlu0.c.b16.cont [2/8] 0, 128
        %526 = vxpose.xlu0.c.b16.cont [3/8] 0, 128
        %527 = vxpose.xlu0.c.b16.cont [4/8] 0, 128
        %528 = vxpose.xlu0.c.b16.cont [5/8] 0, 128
        %529 = vxpose.xlu0.c.b16.cont [6/8] 0, 128
        %530 = vxpose.xlu0.c.b16.cont [7/8] 0, 128
        %531 = vxpose.xlu0.c.b16.end [8/8] 0, 128
        %v532 = vpop.trf.xlu0
        %v533 = vpop.trf.xlu0
        %v534 = vpop.trf.xlu0
        %v535 = vpop.trf.xlu0
        %v536 = vpop.trf.xlu0
        %v537 = vpop.trf.xlu0
        %v538 = vpop.trf.xlu0
        %v539 = vpop.trf.xlu0
        %v541 = vsel %vm334, %v532, 0
        %v544 = vsel %vm334, %v533, 0
        %v547 = vsel %vm334, %v534, 0
        %v550 = vsel %vm334, %v535, 0
        %v553 = vsel %vm334, %v536, 0
        %v556 = vsel %vm334, %v537, 0
        %v559 = vsel %vm334, %v538, 0
        %v562 = vsel %vm334, %v539, 0
        %vm564 = vcmask 1043456
        %v566 = vsel %vm564, %v522, 0
        %v569 = vsel %vm564, %v523, 0
        %571 = vmatprep.subr.bf16.mxu0 %v569
        %572 = vmatpush1.bf16.msra.mxu0 %v566
        %573 = vmatprep.subr.bf16.mxu0 0
        %574 = vmatpush1.bf16.msra.mxu0 0
        %575 = vmatprep.subr.bf16.mxu0 0
        %576 = vmatpush1.bf16.msra.mxu0 0
        %577 = vmatprep.subr.bf16.mxu0 0
        %578 = vmatpush1.bf16.msra.mxu0 0
        %579 = vmatprep.subr.bf16.mxu0 0
        %580 = vmatpush1.bf16.msra.mxu0 0
        %581 = vmatprep.subr.bf16.mxu0 0
        %582 = vmatpush1.bf16.msra.mxu0 0
        %583 = vmatprep.subr.bf16.mxu0 0
        %584 = vmatpush1.bf16.msra.mxu0 0
        %585 = vmatprep.subr.bf16.mxu0 0
        %586 = vmatpush1.bf16.msra.mxu0 0
        %587 = vmatprep.subr.bf16.mxu0 0
        %588 = vmatpush1.bf16.msra.mxu0 0
        %589 = vmatprep.subr.bf16.mxu0 0
        %590 = vmatpush1.bf16.msra.mxu0 0
        %591 = vmatprep.subr.bf16.mxu0 0
        %592 = vmatpush1.bf16.msra.mxu0 0
        %593 = vmatprep.subr.bf16.mxu0 0
        %594 = vmatpush1.bf16.msra.mxu0 0
        %595 = vmatprep.subr.bf16.mxu0 0
        %596 = vmatpush1.bf16.msra.mxu0 0
        %597 = vmatprep.subr.bf16.mxu0 0
        %598 = vmatpush1.bf16.msra.mxu0 0
        %599 = vmatprep.subr.bf16.mxu0 0
        %600 = vmatpush1.bf16.msra.mxu0 0
        %601 = vmatprep.subr.bf16.mxu0 0
        %602 = vmatpush1.bf16.msra.mxu0 0
        %603 = vmatprep.mubr.bf16.mxu0 0
        %604 = vmatmul.mubr.bf16.gmra.mrb[0].mxu0 %v541
        %v605 = vpop.f32.mrb[0].mxu0
        %v606 = vadd.f32 0.0, %v605
        %v607 = vpop.f32.mrb[0].mxu0
        %v608 = vadd.f32 0.0, %v607
        %v609 = vpop.f32.mrb[0].mxu0
        %v610 = vadd.f32 0.0, %v609
        %v611 = vpop.f32.mrb[0].mxu0
        %v612 = vadd.f32 0.0, %v611
        %613 = vmatprep.mubr.bf16.mxu0 0
        %614 = vmatmul.mubr.bf16.gmra.mrb[0].mxu0 %v544
        %v615 = vpop.f32.mrb[0].mxu0
        %v616 = vadd.f32 0.0, %v615
        %v617 = vpop.f32.mrb[0].mxu0
        %v618 = vadd.f32 0.0, %v617
        %v619 = vpop.f32.mrb[0].mxu0
        %v620 = vadd.f32 0.0, %v619
        %v621 = vpop.f32.mrb[0].mxu0
        %v622 = vadd.f32 0.0, %v621
        %623 = vmatprep.mubr.bf16.mxu0 0
        %624 = vmatmul.mubr.bf16.gmra.mrb[0].mxu0 %v547
        %v625 = vpop.f32.mrb[0].mxu0
        %v626 = vadd.f32 0.0, %v625
        %v627 = vpop.f32.mrb[0].mxu0
        %v628 = vadd.f32 0.0, %v627
        %v629 = vpop.f32.mrb[0].mxu0
        %v630 = vadd.f32 0.0, %v629
        %v631 = vpop.f32.mrb[0].mxu0
        %v632 = vadd.f32 0.0, %v631
        %633 = vmatprep.mubr.bf16.mxu0 0
        %634 = vmatmul.mubr.bf16.gmra.mrb[0].mxu0 %v550
        %v635 = vpop.f32.mrb[0].mxu0
        %v636 = vadd.f32 0.0, %v635
        %v637 = vpop.f32.mrb[0].mxu0
        %v638 = vadd.f32 0.0, %v637
        %v639 = vpop.f32.mrb[0].mxu0
        %v640 = vadd.f32 0.0, %v639
        %v641 = vpop.f32.mrb[0].mxu0
        %v642 = vadd.f32 0.0, %v641
        %643 = vmatprep.mubr.bf16.mxu0 0
        %644 = vmatmul.mubr.bf16.gmra.mrb[0].mxu0 %v553
        %v645 = vpop.f32.mrb[0].mxu0
        %v646 = vadd.f32 0.0, %v645
        %v647 = vpop.f32.mrb[0].mxu0
        %v648 = vadd.f32 0.0, %v647
        %v649 = vpop.f32.mrb[0].mxu0
        %v650 = vadd.f32 0.0, %v649
        %v651 = vpop.f32.mrb[0].mxu0
        %v652 = vadd.f32 0.0, %v651
        %653 = vmatprep.mubr.bf16.mxu0 0
        %654 = vmatmul.mubr.bf16.gmra.mrb[0].mxu0 %v556
        %v655 = vpop.f32.mrb[0].mxu0
        %v656 = vadd.f32 0.0, %v655
        %v657 = vpop.f32.mrb[0].mxu0
        %v658 = vadd.f32 0.0, %v657
        %v659 = vpop.f32.mrb[0].mxu0
        %v660 = vadd.f32 0.0, %v659
        %v661 = vpop.f32.mrb[0].mxu0
        %v662 = vadd.f32 0.0, %v661
        %663 = vmatprep.mubr.bf16.mxu0 0
        %664 = vmatmul.mubr.bf16.gmra.mrb[0].mxu0 %v559
        %v665 = vpop.f32.mrb[0].mxu0
        %v666 = vadd.f32 0.0, %v665
        %v667 = vpop.f32.mrb[0].mxu0
        %v668 = vadd.f32 0.0, %v667
        %v669 = vpop.f32.mrb[0].mxu0
        %v670 = vadd.f32 0.0, %v669
        %v671 = vpop.f32.mrb[0].mxu0
        %v672 = vadd.f32 0.0, %v671
        %673 = vmatprep.mubr.bf16.mxu0 0
        %674 = vmatmul.mubr.bf16.gmra.mrb[0].mxu0 %v562
        %v675 = vpop.f32.mrb[0].mxu0
        %v676 = vadd.f32 0.0, %v675
        %v677 = vpop.f32.mrb[0].mxu0
        %v678 = vadd.f32 0.0, %v677
        %v679 = vpop.f32.mrb[0].mxu0
        %v680 = vadd.f32 0.0, %v679
        %v681 = vpop.f32.mrb[0].mxu0
        %v682 = vadd.f32 0.0, %v681
        %683 = vdwg.mxu0
        %v684 = vmax.f32 %v606, %v608
        %685 = vmax.xlane.f32.xlu0 %v684
        %v686 = vpop.xlane.xlu0 %685
        %v687 = vmax.f32 %v610, %v612
        %688 = vmax.xlane.f32.xlu0 %v687
        %v689 = vpop.xlane.xlu0 %688
        %v690 = vmax.f32 %v616, %v618
        %691 = vmax.xlane.f32.xlu0 %v690
        %v692 = vpop.xlane.xlu0 %691
        %v693 = vmax.f32 %v620, %v622
        %694 = vmax.xlane.f32.xlu0 %v693
        %v695 = vpop.xlane.xlu0 %694
        %v696 = vmax.f32 %v626, %v628
        %697 = vmax.xlane.f32.xlu0 %v696
        %v698 = vpop.xlane.xlu0 %697
        %v699 = vmax.f32 %v630, %v632
        %700 = vmax.xlane.f32.xlu0 %v699
        %v701 = vpop.xlane.xlu0 %700
        %v702 = vmax.f32 %v636, %v638
        %703 = vmax.xlane.f32.xlu0 %v702
        %v704 = vpop.xlane.xlu0 %703
        %v705 = vmax.f32 %v640, %v642
        %706 = vmax.xlane.f32.xlu0 %v705
        %v707 = vpop.xlane.xlu0 %706
        %v708 = vmax.f32 %v646, %v648
        %709 = vmax.xlane.f32.xlu0 %v708
        %v710 = vpop.xlane.xlu0 %709
        %v711 = vmax.f32 %v650, %v652
        %712 = vmax.xlane.f32.xlu0 %v711
        %v713 = vpop.xlane.xlu0 %712
        %v714 = vmax.f32 %v656, %v658
        %715 = vmax.xlane.f32.xlu0 %v714
        %v716 = vpop.xlane.xlu0 %715
        %v717 = vmax.f32 %v660, %v662
        %718 = vmax.xlane.f32.xlu0 %v717
        %v719 = vpop.xlane.xlu0 %718
        %v720 = vmax.f32 %v666, %v668
        %721 = vmax.xlane.f32.xlu0 %v720
        %v722 = vpop.xlane.xlu0 %721
        %v723 = vmax.f32 %v670, %v672
        %724 = vmax.xlane.f32.xlu0 %v723
        %v725 = vpop.xlane.xlu0 %724
        %v726 = vmax.f32 %v676, %v678
        %727 = vmax.xlane.f32.xlu0 %v726
        %v728 = vpop.xlane.xlu0 %727
        %v729 = vmax.f32 %v680, %v682
        %730 = vmax.xlane.f32.xlu0 %v729
        %v731 = vpop.xlane.xlu0 %730
        %v732 = vsub.f32 %v606, %v686
        %v733 = vsub.f32 %v608, %v686
        %v734 = vsub.f32 %v610, %v689
        %v735 = vsub.f32 %v612, %v689
        %v736 = vsub.f32 %v616, %v692
        %v737 = vsub.f32 %v618, %v692
        %v738 = vsub.f32 %v620, %v695
        %v739 = vsub.f32 %v622, %v695
        %v740 = vsub.f32 %v626, %v698
        %v741 = vsub.f32 %v628, %v698
        %v742 = vsub.f32 %v630, %v701
        %v743 = vsub.f32 %v632, %v701
        %v744 = vsub.f32 %v636, %v704
        %v745 = vsub.f32 %v638, %v704
        %v746 = vsub.f32 %v640, %v707
        %v747 = vsub.f32 %v642, %v707
        %v748 = vsub.f32 %v646, %v710
        %v749 = vsub.f32 %v648, %v710
        %v750 = vsub.f32 %v650, %v713
        %v751 = vsub.f32 %v652, %v713
        %v752 = vsub.f32 %v656, %v716
        %v753 = vsub.f32 %v658, %v716
        %v754 = vsub.f32 %v660, %v719
        %v755 = vsub.f32 %v662, %v719
        %v756 = vsub.f32 %v666, %v722
        %v757 = vsub.f32 %v668, %v722
        %v758 = vsub.f32 %v670, %v725
        %v759 = vsub.f32 %v672, %v725
        %v760 = vsub.f32 %v676, %v728
        %v761 = vsub.f32 %v678, %v728
        %v762 = vsub.f32 %v680, %v731
        %v763 = vsub.f32 %v682, %v731
        %v764 = vmul.f32 %v732, 1.442695
        %v765 = vpow.pop %v764
        %v766 = vmul.f32 %v733, 1.442695
        %v767 = vpow.pop %v766
        %v768 = vmul.f32 %v734, 1.442695
        %v769 = vpow.pop %v768
        %v770 = vmul.f32 %v735, 1.442695
        %v771 = vpow.pop %v770
        %v772 = vmul.f32 %v736, 1.442695
        %v773 = vpow.pop %v772
        %v774 = vmul.f32 %v737, 1.442695
        %v775 = vpow.pop %v774
        %v776 = vmul.f32 %v738, 1.442695
        %v777 = vpow.pop %v776
        %v778 = vmul.f32 %v739, 1.442695
        %v779 = vpow.pop %v778
        %v780 = vmul.f32 %v740, 1.442695
        %v781 = vpow.pop %v780
        %v782 = vmul.f32 %v741, 1.442695
        %v783 = vpow.pop %v782
        %v784 = vmul.f32 %v742, 1.442695
        %v785 = vpow.pop %v784
        %v786 = vmul.f32 %v743, 1.442695
        %v787 = vpow.pop %v786
        %v788 = vmul.f32 %v744, 1.442695
        %v789 = vpow.pop %v788
        %v790 = vmul.f32 %v745, 1.442695
        %v791 = vpow.pop %v790
        %v792 = vmul.f32 %v746, 1.442695
        %v793 = vpow.pop %v792
        %v794 = vmul.f32 %v747, 1.442695
        %v795 = vpow.pop %v794
        %v796 = vmul.f32 %v748, 1.442695
        %v797 = vpow.pop %v796
        %v798 = vmul.f32 %v749, 1.442695
        %v799 = vpow.pop %v798
        %v800 = vmul.f32 %v750, 1.442695
        %v801 = vpow.pop %v800
        %v802 = vmul.f32 %v751, 1.442695
        %v803 = vpow.pop %v802
        %v804 = vmul.f32 %v752, 1.442695
        %v805 = vpow.pop %v804
        %v806 = vmul.f32 %v753, 1.442695
        %v807 = vpow.pop %v806
        %v808 = vmul.f32 %v754, 1.442695
        %v809 = vpow.pop %v808
        %v810 = vmul.f32 %v755, 1.442695
        %v811 = vpow.pop %v810
        %v812 = vmul.f32 %v756, 1.442695
        %v813 = vpow.pop %v812
        %v814 = vmul.f32 %v757, 1.442695
        %v815 = vpow.pop %v814
        %v816 = vmul.f32 %v758, 1.442695
        %v817 = vpow.pop %v816
        %v818 = vmul.f32 %v759, 1.442695
        %v819 = vpow.pop %v818
        %v820 = vmul.f32 %v760, 1.442695
        %v821 = vpow.pop %v820
        %v822 = vmul.f32 %v761, 1.442695
        %v823 = vpow.pop %v822
        %v824 = vmul.f32 %v762, 1.442695
        %v825 = vpow.pop %v824
        %v826 = vmul.f32 %v763, 1.442695
        %v827 = vpow.pop %v826
        %v828 = vpack.c.bf16 %v517, %v511
        %v829 = vpack.c.bf16 %v519, %v513
        %v830 = vpack.c.bf16 %v769, %v765
        %v831 = vpack.c.bf16 %v771, %v767
        %v832 = vpack.c.bf16 %v777, %v773
        %v833 = vpack.c.bf16 %v779, %v775
        %v834 = vpack.c.bf16 %v785, %v781
        %v835 = vpack.c.bf16 %v787, %v783
        %v836 = vpack.c.bf16 %v793, %v789
        %v837 = vpack.c.bf16 %v795, %v791
        %v838 = vpack.c.bf16 %v801, %v797
        %v839 = vpack.c.bf16 %v803, %v799
        %v840 = vpack.c.bf16 %v809, %v805
        %v841 = vpack.c.bf16 %v811, %v807
        %v842 = vpack.c.bf16 %v817, %v813
        %v843 = vpack.c.bf16 %v819, %v815
        %v844 = vpack.c.bf16 %v825, %v821
        %v845 = vpack.c.bf16 %v827, %v823
        %846 = vmatprep.subr.bf16.mxu0 %v831
        %847 = vmatpush1.bf16.xpose.msra.mxu0 %v830
        %848 = vmatprep.subr.bf16.mxu0 %v833
        %849 = vmatpush1.bf16.xpose.msra.mxu0 %v832
        %850 = vmatprep.subr.bf16.mxu0 %v835
        %851 = vmatpush1.bf16.xpose.msra.mxu0 %v834
        %852 = vmatprep.subr.bf16.mxu0 %v837
        %853 = vmatpush1.bf16.xpose.msra.mxu0 %v836
        %854 = vmatprep.subr.bf16.mxu0 %v839
        %855 = vmatpush1.bf16.xpose.msra.mxu0 %v838
        %856 = vmatprep.subr.bf16.mxu0 %v841
        %857 = vmatpush1.bf16.xpose.msra.mxu0 %v840
        %858 = vmatprep.subr.bf16.mxu0 %v843
        %859 = vmatpush1.bf16.xpose.msra.mxu0 %v842
        %860 = vmatprep.subr.bf16.mxu0 %v845
        %861 = vmatpush1.bf16.xpose.msra.mxu0 %v844
        %862 = vmatprep.subr.bf16.mxu0 0
        %863 = vmatpush1.bf16.xpose.msra.mxu0 0
        %864 = vmatprep.subr.bf16.mxu0 0
        %865 = vmatpush1.bf16.xpose.msra.mxu0 0
        %866 = vmatprep.subr.bf16.mxu0 0
        %867 = vmatpush1.bf16.xpose.msra.mxu0 0
        %868 = vmatprep.subr.bf16.mxu0 0
        %869 = vmatpush1.bf16.xpose.msra.mxu0 0
        %870 = vmatprep.subr.bf16.mxu0 0
        %871 = vmatpush1.bf16.xpose.msra.mxu0 0
        %872 = vmatprep.subr.bf16.mxu0 0
        %873 = vmatpush1.bf16.xpose.msra.mxu0 0
        %874 = vmatprep.subr.bf16.mxu0 0
        %875 = vmatpush1.bf16.xpose.msra.mxu0 0
        %876 = vmatprep.subr.bf16.mxu0 0
        %877 = vmatpush1.bf16.xpose.msra.mxu0 0
        %878 = vmatprep.mubr.bf16.mxu0 %v829
        %879 = vmatmul.mubr.bf16.gmra.mrb[0].mxu0 %v828
        %v880 = vpop.f32.mrb[0].mxu0
        %v881 = vadd.f32 0.0, %v880
        %v882 = vpop.f32.mrb[0].mxu0
        %v883 = vpop.f32.mrb[0].mxu0
        %v884 = vadd.f32 0.0, %v883
        %v885 = vpop.f32.mrb[0].mxu0
        %886 = vdwg.mxu0
        %s887 = sld [smem:[#allocation2]]
        %v888 = vrcp.pop %v884
        %v889 = vstv %s887
        %v890 = vmul.f32 %v889, %v888
        %v891 = vlaneseq
        %v892 = vshrl.u32 %v891, 7
        %v893 = vsub.s32 0, %v892
        %v894 = vrot.slane %v890, %v893
        %v895 = vmul.f32 %v881, %v894
        %v896 = vadd.f32 %v895, %v324
        %897 = vst [vmem:[%s309] sm:$0xff] %v896
        %s898 = sand.u32 %s203, 1
        %s899 = scalar_lea.sflag [#allocation4], %s898
        %s900 = sand.u32 %s203, 1
        %s901 = smul.addr %s900, 8
        %s902 = scalar_lea.vmem [#allocation3], %s901
        // Predicated region
        $region49: #{tpu_custom_call.1} parent=47 // pred_check
          %p903 = pneg %p213
        $region50: #{tpu_custom_call.1} parent=47 // pred_check_branch
          %905 = sbr.rel (%p903) target = $region52
        $region51: #{tpu_custom_call.1} parent=47 // pred_region
          %s907 = ssub.s32 128, 128
          %908 = vsyncadd %s899, %s907
          %s909 = smul.addr %s26, 2
          %s910 = sadd.s32 %s27, %s909
          %s911 = smul.addr %s910, 128
          %s912 = scalar_lea.hbm %s7, %s911
          %s914 = sshll.u32 %s902, 4
          %s915 = int_to_ptr.vmem [resolvable:$true] %s914
          %917 = dma.vmem_to_hbm [thread:$0]  %s915, 128, %s912, %s899
        $region52: #{tpu_custom_call.1} parent=47 // pred_fallthru
          _
      $region48: #{tpu_custom_call.1} parent=5 // pred_fallthru
        _
      %p918 = scmp.le.s32.totalorder 2, %s17
      // Predicated region
      $region53: #{tpu_custom_call.1} parent=5 // pred_check
        %p919 = pneg %p918
      $region54: #{tpu_custom_call.1} parent=5 // pred_check_branch
        %921 = sbr.rel (%p919) target = $region56
      $region55: #{tpu_custom_call.1} parent=5 // pred_region
        %s922 = ssub.s32 %s17, 2
        // Predicated region
        $region57: #{tpu_custom_call.1} parent=55 // pred_check
          %p923 = pneg %p219
        $region58: #{tpu_custom_call.1} parent=55 // pred_check_branch
          %925 = sbr.rel (%p923) target = $region60
        $region59: #{tpu_custom_call.1} parent=55 // pred_region
          %s926 = sand.u32 %s204, 1
          %s927 = scalar_lea.sflag [#allocation4], %s926
          %s928 = sand.u32 %s204, 1
          %s929 = smul.addr %s928, 8
          %s930 = scalar_lea.vmem [#allocation3], %s929
          %931 = dma.done %s927, 128
        $region60: #{tpu_custom_call.1} parent=55 // pred_fallthru
          _
      $region56: #{tpu_custom_call.1} parent=5 // pred_fallthru
        _
    $region6: #{tpu_custom_call.1} parent=1 // loop_footer
      %s21 = sadd.s32 1, %s17
    $region7: #{tpu_custom_call.1} parent=1 // loop_footer_branch
      %16 = sbr.rel target = $region3
    $region8: #{tpu_custom_call.1} parent=1 // loop_exit
      _
    %932 = vsyncpa [#allocation4], 1
    %s933 = scalar_lea.sflag [#allocation4], 1
    %934 = vsyncpa %s933, 1

</llo_original>
